<compile_context>
chip_gen: v7x
topology: tpu7x:2x2x1
jax: 0.10.0
libtpu: 0.0.40
codegen_flags: <defaults>
</compile_context>

<pallas_src>
import math
import functools

import jax
import jax.numpy as jnp
from jax.experimental import pallas as pl
from jax.experimental.pallas import tpu as pltpu


def _bert_embedding_kernel(tok_ids_ref,      # SMEM, (B*L,) int32   (scalar prefetch)
                           seg_ids_ref,      # VMEM, (1, TILE_L, 1) int32
                           pe_ref,           # VMEM, (TILE_L, D) f32 (per-tile slice)
                           seg_tbl_ref,      # VMEM, (3, D) f32      (resident)
                           tok_hbm,          # HBM,  (V, D)          (memory_space=pl.ANY)
                           out_ref,          # VMEM, (1, TILE_L, D)
                           gbuf,             # VMEM scratch, (TILE_L, D)
                           gsems,            # DMA semaphores, (TILE_L,)
                           *, tile_l, seq_len, scale, train):
    b = pl.program_id(0)
    lt = pl.program_id(1)
    row0 = b * seq_len + lt * tile_l

    # 1) Launch TILE_L row-gather DMAs from the token embedding table (all in flight).
    @pl.loop(0, tile_l)
    def _(i):
        tid = tok_ids_ref[row0 + i]
        pltpu.make_async_copy(tok_hbm.at[tid], gbuf.at[i], gsems.at[i]).start()

    # 2) While the gather flies: positional-encoding tile (auto-pipelined into VMEM).
    other = pe_ref[...]                                        # (TILE_L, D)

    if train:
        # Segment embedding: 3-row resident table, per-row 3-way VPU select.
        sids = seg_ids_ref[0]                                  # (TILE_L, 1) int32
        tbl = seg_tbl_ref[...]                                 # (3, D)
        seg = jnp.where(sids == 0, tbl[0:1, :],
              jnp.where(sids == 1, tbl[1:2, :], tbl[2:3, :]))  # (TILE_L, D)
        other = other + seg

    # 3) Wait for the gathered token rows, finish, and store one lane-dense slab.
    @pl.loop(0, tile_l)
    def _(i):
        pltpu.make_async_copy(tok_hbm.at[0], gbuf.at[i], gsems.at[i]).wait()

    tok = gbuf[...].astype(jnp.float32)                        # (TILE_L, D)
    out_ref[0] = (tok * (2.0 * scale) + other).astype(out_ref.dtype)


def bert_embedding(tokens, segment_labels, token_table, pe_table, segment_table,
                   *, train=True, tile_l=None):
    """tokens/segment_labels: (B, L) int32; tables: (V,D), (max_len,D), (3,D)."""
    B, L = tokens.shape
    V, D = token_table.shape
    if tile_l is None:
        tile_l = L if L <= 256 else 256     # 256 rows amortizes per-step overhead at prod shapes
    assert L % tile_l == 0 and tile_l % 8 == 0, "TILE_L must divide L and be a multiple of 8"
    scale = float(math.sqrt(D))

    tok_flat = tokens.reshape(-1).astype(jnp.int32)            # flat -> cheap 1-D SMEM prefetch
    seg_ids = segment_labels.reshape(B, L, 1).astype(jnp.int32)
    pe_sliced = pe_table[:L].astype(jnp.float32)               # (L, D), tiled per grid step
    seg_tbl = segment_table.astype(jnp.float32)

    kernel = functools.partial(_bert_embedding_kernel,
                               tile_l=tile_l, seq_len=L, scale=scale, train=train)

    grid_spec = pltpu.PrefetchScalarGridSpec(
        num_scalar_prefetch=1,
        grid=(B, L // tile_l),
        in_specs=[
            pl.BlockSpec((1, tile_l, 1), lambda b, lt, tok: (b, lt, 0)),   # segment ids
            pl.BlockSpec((tile_l, D), lambda b, lt, tok: (lt, 0)),         # pos-enc tile
            pl.BlockSpec((3, D), lambda b, lt, tok: (0, 0)),               # segment table (resident)
            pl.BlockSpec(memory_space=pl.ANY),                             # token table stays in HBM
        ],
        out_specs=pl.BlockSpec((1, tile_l, D), lambda b, lt, tok: (b, lt, 0)),
        scratch_shapes=[
            pltpu.VMEM((tile_l, D), token_table.dtype),                    # gathered token rows
            pltpu.SemaphoreType.DMA((tile_l,)),
        ],
    )

    return pl.pallas_call(
        kernel,
        out_shape=jax.ShapeDtypeStruct((B, L, D), jnp.float32),
        grid_spec=grid_spec,
        compiler_params=pltpu.CompilerParams(
            # every (b, lt) step is independent -> shard freely across TensorCores.
            dimension_semantics=("parallel", "parallel")),
    )(tok_flat, seg_ids, pe_sliced, seg_tbl, token_table)


def make_positional_encoding(max_len, embedding_dim):
    position = jnp.arange(0, max_len, dtype=jnp.float32)[:, None]
    div_term = jnp.exp(-jnp.arange(0, embedding_dim, 2, dtype=jnp.float32)
                       * math.log(10000.0) / embedding_dim)
    pe = jnp.zeros((max_len, embedding_dim), dtype=jnp.float32)
    pe = pe.at[:, 0::2].set(jnp.sin(position * div_term))
    pe = pe.at[:, 1::2].set(jnp.cos(position * div_term))
    return pe


def reference_forward(tokens, segment_labels, token_table, pe_table, segment_table,
                      *, train=True):
    D = token_table.shape[1]
    my_emb = token_table[tokens] * jnp.sqrt(jnp.float32(D))
    pe = pe_table[None, :tokens.shape[1], :]
    if train:
        return my_emb + (my_emb + pe) + segment_table[segment_labels]
    return my_emb + (my_emb + pe)


if __name__ == "__main__":
    # small, BERT-flavored shapes; D a multiple of 128 -> lane-dense output slabs
    B, L, D = 2, 16, 128
    VOCAB = 64
    MAX_LEN = 32

    key = jax.random.PRNGKey(0)
    k_tok, k_seg_tbl, k_ids, k_segids = jax.random.split(key, 4)

    # deterministic parameter init (nn.Embedding default ~ N(0, 1))
    token_table = jax.random.normal(k_tok, (VOCAB, D), dtype=jnp.float32)
    segment_table = jax.random.normal(k_seg_tbl, (3, D), dtype=jnp.float32)
    pe_table = make_positional_encoding(MAX_LEN, D)

    tokens = jax.random.randint(k_ids, (B, L), 0, VOCAB, dtype=jnp.int32)
    segment_labels = jax.random.randint(k_segids, (B, L), 0, 3, dtype=jnp.int32)

    out = bert_embedding(tokens, segment_labels, token_table, pe_table, segment_table,
                         train=True, tile_l=8)       # tile_l=8 -> grid (2, 2) exercises tiling
    out = jax.block_until_ready(out)

    ref = reference_forward(tokens, segment_labels, token_table, pe_table, segment_table,
                            train=True)
    assert out.shape == (B, L, D)
    assert jnp.allclose(out, ref, atol=1e-4, rtol=1e-5), "mismatch vs reference"

    print("KERNEL_OK")
</pallas_src>

<mosaic_0001>
module attributes {stable_mosaic.version = 11 : i64} {
  func.func @_bert_embedding_kernel(%arg0: i32, %arg1: i32, %arg2: memref<32xi32, #tpu.memory_space<smem>>, %arg3: memref<1x8x1xi32, #tpu.memory_space<vmem>>, %arg4: memref<8x128xf32, #tpu.memory_space<vmem>>, %arg5: memref<3x128xf32, #tpu.memory_space<vmem>>, %arg6: memref<64x128xf32, #tpu.memory_space<any>>, %arg7: memref<1x8x128xf32, #tpu.memory_space<vmem>>, %arg8: memref<8x128xf32, #tpu.memory_space<vmem>>, %arg9: memref<8x!tpu.dma_semaphore, #tpu.memory_space<semaphore_mem>>) attributes {dimension_semantics = [#tpu.dimension_semantics<parallel>, #tpu.dimension_semantics<parallel>], iteration_bounds = array<i64: 2, 2>, scalar_prefetch = 1 : i64, scratch_operands = 2 : i64, tpu.core_type = #tpu.core_type<tc>, window_params = [{transform_indices = @transform_0, window_bounds = array<i64: 1, 8, 1>}, {transform_indices = @transform_1, window_bounds = array<i64: 8, 128>}, {pipeline_mode = #tpu.pipeline_mode<synchronous>, transform_indices = @transform_2, window_bounds = array<i64: 3, 128>}, {}, {transform_indices = @transform_4, window_bounds = array<i64: 1, 8, 128>}]} {
    %c16_i32 = arith.constant 16 : i32
    %0 = arith.muli %arg0, %c16_i32 : i32
    %c8_i32 = arith.constant 8 : i32
    %1 = arith.muli %arg1, %c8_i32 : i32
    %2 = arith.addi %0, %1 : i32
    %c0_i32 = arith.constant 0 : i32
    %c8_i32_0 = arith.constant 8 : i32
    %3 = arith.addi %c0_i32, %c8_i32_0 : i32
    %c1_i32 = arith.constant 1 : i32
    scf.for %arg10 = %c0_i32 to %3 step %c1_i32  : i32 {
      %c1_i32_19 = arith.constant 1 : i32
      %36 = arith.muli %arg10, %c1_i32_19 : i32
      %c0_i32_20 = arith.constant 0 : i32
      %37 = arith.addi %c0_i32_20, %36 : i32
      %38 = arith.addi %2, %37 : i32
      %39 = arith.index_cast %38 : i32 to index
      %40 = memref.load %arg2[%39] : memref<32xi32, #tpu.memory_space<smem>>
      %c0_i32_21 = arith.constant 0 : i32
      %41 = tpu.memref_slice %arg6[%40, %c0_i32_21] : memref<64x128xf32, #tpu.memory_space<any>> -> memref<1x128xf32, #tpu.memory_space<any>>
      %42 = tpu.memref_squeeze %41 : memref<1x128xf32, #tpu.memory_space<any>> -> memref<128xf32, #tpu.memory_space<any>>
      %c0_i32_22 = arith.constant 0 : i32
      %43 = tpu.memref_slice %arg8[%37, %c0_i32_22] : memref<8x128xf32, #tpu.memory_space<vmem>> -> memref<1x128xf32, #tpu.memory_space<vmem>>
      %44 = tpu.memref_squeeze %43 : memref<1x128xf32, #tpu.memory_space<vmem>> -> memref<128xf32, #tpu.memory_space<vmem>>
      %45 = tpu.memref_slice %arg9[%37] : memref<8x!tpu.dma_semaphore, #tpu.memory_space<semaphore_mem>> -> memref<1x!tpu.dma_semaphore, #tpu.memory_space<semaphore_mem>>
      %46 = tpu.memref_squeeze %45 : memref<1x!tpu.dma_semaphore, #tpu.memory_space<semaphore_mem>> -> memref<!tpu.dma_semaphore, #tpu.memory_space<semaphore_mem>>
      tpu.enqueue_dma source(%42 : memref<128xf32, #tpu.memory_space<any>>) target(%44 : memref<128xf32, #tpu.memory_space<vmem>>) target_semaphore(%46 : memref<!tpu.dma_semaphore, #tpu.memory_space<semaphore_mem>>)
    }
    %c8_i32_1 = arith.constant 8 : i32
    %c0 = arith.constant 0 : index
    %c0_2 = arith.constant 0 : index
    %4 = vector.load %arg4[%c0, %c0_2] : memref<8x128xf32, #tpu.memory_space<vmem>>, vector<8x128xf32>
    %c0_3 = arith.constant 0 : index
    %c0_4 = arith.constant 0 : index
    %c0_5 = arith.constant 0 : index
    %5 = vector.load %arg3[%c0_3, %c0_4, %c0_5] : memref<1x8x1xi32, #tpu.memory_space<vmem>>, vector<1x8x1xi32>
    %6 = vector.shape_cast %5 : vector<1x8x1xi32> to vector<8x1xi32>
    %c0_6 = arith.constant 0 : index
    %c0_7 = arith.constant 0 : index
    %7 = vector.load %arg5[%c0_6, %c0_7] : memref<3x128xf32, #tpu.memory_space<vmem>>, vector<3x128xf32>
    %c0_i32_8 = arith.constant 0 : i32
    %8 = vector.broadcast %c0_i32_8 : i32 to vector<8x1xi32>
    %9 = arith.cmpi eq, %6, %8 : vector<8x1xi32>
    %10 = vector.extract_strided_slice %7 {offsets = [0, 0], sizes = [1, 128], strides = [1, 1]} : vector<3x128xf32> to vector<1x128xf32>
    %c1_i32_9 = arith.constant 1 : i32
    %11 = vector.broadcast %c1_i32_9 : i32 to vector<8x1xi32>
    %12 = arith.cmpi eq, %6, %11 : vector<8x1xi32>
    %13 = vector.extract_strided_slice %7 {offsets = [1, 0], sizes = [1, 128], strides = [1, 1]} : vector<3x128xf32> to vector<1x128xf32>
    %14 = vector.extract_strided_slice %7 {offsets = [2, 0], sizes = [1, 128], strides = [1, 1]} : vector<3x128xf32> to vector<1x128xf32>
    %15 = vector.shape_cast %12 : vector<8x1xi1> to vector<8x1xi1>
    %16 = vector.broadcast %15 : vector<8x1xi1> to vector<8x128xi1>
    %17 = vector.shape_cast %13 : vector<1x128xf32> to vector<1x128xf32>
    %18 = vector.broadcast %17 : vector<1x128xf32> to vector<8x128xf32>
    %19 = vector.shape_cast %14 : vector<1x128xf32> to vector<1x128xf32>
    %20 = vector.broadcast %19 : vector<1x128xf32> to vector<8x128xf32>
    %21 = arith.select %16, %18, %20 : vector<8x128xi1>, vector<8x128xf32>
    %22 = vector.shape_cast %9 : vector<8x1xi1> to vector<8x1xi1>
    %23 = vector.broadcast %22 : vector<8x1xi1> to vector<8x128xi1>
    %24 = vector.shape_cast %10 : vector<1x128xf32> to vector<1x128xf32>
    %25 = vector.broadcast %24 : vector<1x128xf32> to vector<8x128xf32>
    %26 = arith.select %23, %25, %21 : vector<8x128xi1>, vector<8x128xf32>
    %27 = arith.addf %4, %26 : vector<8x128xf32>
    %c0_i32_10 = arith.constant 0 : i32
    %c8_i32_11 = arith.constant 8 : i32
    %28 = arith.addi %c0_i32_10, %c8_i32_11 : i32
    %c1_i32_12 = arith.constant 1 : i32
    scf.for %arg10 = %c0_i32_10 to %28 step %c1_i32_12  : i32 {
      %c1_i32_19 = arith.constant 1 : i32
      %36 = arith.muli %arg10, %c1_i32_19 : i32
      %c0_i32_20 = arith.constant 0 : i32
      %37 = arith.addi %c0_i32_20, %36 : i32
      %c0_i32_21 = arith.constant 0 : i32
      %c0_i32_22 = arith.constant 0 : i32
      %38 = tpu.memref_slice %arg6[%c0_i32_21, %c0_i32_22] : memref<64x128xf32, #tpu.memory_space<any>> -> memref<1x128xf32, #tpu.memory_space<any>>
      %39 = tpu.memref_squeeze %38 : memref<1x128xf32, #tpu.memory_space<any>> -> memref<128xf32, #tpu.memory_space<any>>
      %c0_i32_23 = arith.constant 0 : i32
      %40 = tpu.memref_slice %arg8[%37, %c0_i32_23] : memref<8x128xf32, #tpu.memory_space<vmem>> -> memref<1x128xf32, #tpu.memory_space<vmem>>
      %41 = tpu.memref_squeeze %40 : memref<1x128xf32, #tpu.memory_space<vmem>> -> memref<128xf32, #tpu.memory_space<vmem>>
      %42 = tpu.memref_slice %arg9[%37] : memref<8x!tpu.dma_semaphore, #tpu.memory_space<semaphore_mem>> -> memref<1x!tpu.dma_semaphore, #tpu.memory_space<semaphore_mem>>
      %43 = tpu.memref_squeeze %42 : memref<1x!tpu.dma_semaphore, #tpu.memory_space<semaphore_mem>> -> memref<!tpu.dma_semaphore, #tpu.memory_space<semaphore_mem>>
      tpu.wait_dma2 semaphore(%43 : memref<!tpu.dma_semaphore, #tpu.memory_space<semaphore_mem>>) src(%39 : memref<128xf32, #tpu.memory_space<any>>) dst(%41 : memref<128xf32, #tpu.memory_space<vmem>>)
    }
    %c8_i32_13 = arith.constant 8 : i32
    %c0_14 = arith.constant 0 : index
    %c0_15 = arith.constant 0 : index
    %29 = vector.load %arg8[%c0_14, %c0_15] : memref<8x128xf32, #tpu.memory_space<vmem>>, vector<8x128xf32>
    %cst = arith.constant 22.6274166 : f32
    %30 = vector.broadcast %cst : f32 to vector<8x128xf32>
    %31 = arith.mulf %29, %30 : vector<8x128xf32>
    %32 = arith.addf %31, %27 : vector<8x128xf32>
    %c0_16 = arith.constant 0 : index
    %c0_17 = arith.constant 0 : index
    %c0_18 = arith.constant 0 : index
    %33 = vector.load %arg7[%c0_16, %c0_17, %c0_18] : memref<1x8x128xf32, #tpu.memory_space<vmem>>, vector<1x8x128xf32>
    %34 = vector.shape_cast %33 : vector<1x8x128xf32> to vector<8x128xf32>
    %35 = vector.shape_cast %32 : vector<8x128xf32> to vector<1x8x128xf32>
    tpu.vector_store %arg7[%c0_16, %c0_17, %c0_18], %35 {strides = array<i32>} : memref<1x8x128xf32, #tpu.memory_space<vmem>>, vector<1x8x128xf32>,
    return
  }
  func.func @transform_0(%arg0: i32, %arg1: i32, %arg2: memref<32xi32, #tpu.memory_space<smem>>) -> (i32, i32, i32) {
    %c0_i32 = arith.constant 0 : i32
    %c0_i32_0 = arith.constant 0 : i32
    return %arg0, %arg1, %c0_i32 : i32, i32, i32
  }
  func.func @transform_1(%arg0: i32, %arg1: i32, %arg2: memref<32xi32, #tpu.memory_space<smem>>) -> (i32, i32) {
    %c0_i32 = arith.constant 0 : i32
    %c0_i32_0 = arith.constant 0 : i32
    return %arg1, %c0_i32 : i32, i32
  }
  func.func @transform_2(%arg0: i32, %arg1: i32, %arg2: memref<32xi32, #tpu.memory_space<smem>>) -> (i32, i32) {
    %c0_i32 = arith.constant 0 : i32
    %c0_i32_0 = arith.constant 0 : i32
    %c0_i32_1 = arith.constant 0 : i32
    return %c0_i32, %c0_i32_0 : i32, i32
  }
  func.func @transform_4(%arg0: i32, %arg1: i32, %arg2: memref<32xi32, #tpu.memory_space<smem>>) -> (i32, i32, i32) {
    %c0_i32 = arith.constant 0 : i32
    %c0_i32_0 = arith.constant 0 : i32
    return %arg0, %arg1, %c0_i32 : i32, i32, i32
  }
}

</mosaic_0001>

<llo_original>
// kernel: tpu_custom_call.1
$region0: #{tpu_custom_call.1}
  #allocation0 [shape = 'u32[]', space=smem, size = 0x4, offset = 0x4, fixed_abs, tag = 'smem constant byte address 0x4 - core index']
  #allocation1 [shape = 'u32[144,128]{1,0:T(1,128)}', space=vmem, size = 0x12000, scoped, tag = 'internal scratch']
  #allocation2 [shape = 'f32[8,128]{1,0:T(8,128)}', space=vmem, size = 0x1000, scoped, tag = 'scratch operand']
  #allocation3 [shape = 's32[8]{0}', space=sflag, size = 0x20, scoped, tag = 'scratch operand']
  #allocation4 [shape = 's32[1]{0}', space=sflag, size = 0x4, scoped, tag = 'scoped memory for tpu_custom_call.1']
  #allocation5 [shape = 'u8[512]{0}', space=smem, size = 0x200, scoped, tag = 'prefetched SMEM operand 0']
  #allocation8 [shape = 's32[]', space=sflag, size = 0x4, offset = 0, fixed_abs, tag = 'sflag constant byte address 0x0 - dummy sync flag']
  #allocation9 [shape = 's32[]', space=sflag, size = 0x4, offset = 0, fixed_abs, tag = 'sflag constant byte address 0x0 - dummy sync flag']
  #allocation10 [shape = 'u32[]', space=smem, size = 0x4, offset = 0x44, fixed_abs, tag = 'smem constant byte address 0x44 - assertion arg 0']
  #allocation11 [shape = 'u32[]', space=smem, size = 0x4, offset = 0x48, fixed_abs, tag = 'smem constant byte address 0x48 - assertion arg 1']
  %s0 = inlined_call_operand.vmem [shape: s32[32], index: 0, kind: input, shape index: {}]
  %s1 = inlined_call_operand.vmem [shape: s32[2,16,1], index: 1, kind: input, shape index: {}]
  %s2 = inlined_call_operand.vmem [shape: f32[16,128], index: 2, kind: input, shape index: {}]
  %s3 = inlined_call_operand.vmem [shape: f32[3,128], index: 3, kind: input, shape index: {}]
  %s4 = inlined_call_operand.hbm [shape: f32[64,128], index: 4, kind: input, shape index: {}]
  %s5 = inlined_call_operand.hbm [shape: f32[2,16,128], index: 5, kind: output, shape index: {}]
  %s6 = sld [smem:[#allocation0]]
  $region63: #{tpu_custom_call.1} parent=0
    _
  %s8 = ssub.s32 1, %s6
  %s9 = scalar_select 0, %s8, %s6
  %s10 = sshll.u32 %s0, 4
  %s11 = int_to_ptr.vmem [resolvable:$true] %s10
  %13 = dma.vmem_to_smem %s11, 16, [#allocation5], [#allocation4]
  %14 = dma.done [#allocation4], 16
  %15 = sfence
  $region1: #{tpu_custom_call.1} parent=0
    #allocation6 [shape = 'u8[8192]{0}', space=vmem, size = 0x2000, scoped, tag = 'output window, operand 0']
    #allocation7 [shape = 's32[2]{0}', space=sflag, size = 0x8, scoped, tag = 'scoped memory for tpu_custom_call.1']
    %16 = vsyncpa [#allocation7], 0
    %s17 = scalar_lea.sflag [#allocation7], 1
    %18 = vsyncpa %s17, 0
    loop: start=0, step=1, limit=6
    $region2: #{tpu_custom_call.1} parent=1 // loop_pre_header
      _
    $region3: #{tpu_custom_call.1} parent=1 // loop_header
      %s20 = sphi 0, %s24
      %p21 = scmp.ge.s32.totalorder %s20, 6
      %s27 = sphi 0, %s39
      %s28 = sphi 0, %s35
      %s29 = sphi 0, %s27
      %s30 = sphi 0, %s28
      %s31 = sphi 0, %s29
      %s32 = sphi 0, %s30
      %s44 = sphi 0, %s46
      %s47 = sphi 0, %s44
      %s48 = sphi 0, %s47
      %s64 = sphi 0, %s48
      %s70 = sphi 0, %s72
      %s73 = sphi 0, %s70
      %s74 = sphi 0, %s73
      %s90 = sphi 0, %s74
      %s94 = sphi 0, %s94
      %s96 = sphi 0, %s94
      %s97 = sphi 0, %s96
      %s111 = sphi 0, %s97
      %s119 = sphi 0, %s121
      %s122 = sphi 0, %s119
      %s123 = sphi 0, %s122
      %s139 = sphi 0, %s123
    $region4: #{tpu_custom_call.1} parent=1 // loop_header_branch
      %23 = sbr.rel (%p21) target = $region8
    $region5: #{tpu_custom_call.1} parent=1 // loop_body
      %s25 = ssub.s32 %s20, 1
      %s26 = ssub.s32 %s20, 2
      %s33 = sadd.s32 1, %s28
      %p34 = scmp.ge.s32.totalorder %s33, 2
      %s35 = scalar_select %p34, 0, %s33
      %s36 = sadd.s32 1, %s27
      %s37 = scalar_select %p34, %s36, %s27
      %p38 = scmp.ge.s32.totalorder %s37, 2
      %s39 = scalar_select %p38, 0, %s37
      %s40 = ssub.s32 %s27, %s39
      %s41 = ssub.s32 %s28, %s35
      %s42 = sor.u32 %s40, %s41
      %p43 = scmp.eq.s32.totalorder %s42, 0
      %s45 = sadd.s32 %s44, 1
      %s46 = scalar_select %p43, %s44, %s45
      %p49 = pneg %p43
      %p50 = scmp.eq.s32.totalorder %s20, 3
      %p51 = por %p49, %p50
      %p52 = scmp.ne.s32.totalorder %s44, %s47
      %p53 = scmp.eq.s32.totalorder %s20, 0
      %p54 = por %p52, %p53
      %p55 = scmp.ne.s32.totalorder %s44, %s47
      %p56 = scmp.eq.s32.totalorder %s25, 3
      %p57 = por %p55, %p56
      %p58 = scmp.ne.s32.totalorder %s47, %s48
      %p59 = scmp.eq.s32.totalorder %s25, 0
      %p60 = por %p58, %p59
      %p61 = scmp.ne.s32.totalorder %s47, %s48
      %p62 = scmp.eq.s32.totalorder %s26, 3
      %p63 = por %p61, %p62
      %p65 = scmp.ne.s32.totalorder %s48, %s64
      %p66 = scmp.eq.s32.totalorder %s26, 0
      %p67 = por %p65, %p66
      %s68 = ssub.s32 %s28, %s35
      %p69 = scmp.eq.s32.totalorder %s68, 0
      %s71 = sadd.s32 %s70, 1
      %s72 = scalar_select %p69, %s70, %s71
      %p75 = pneg %p69
      %p76 = scmp.eq.s32.totalorder %s20, 3
      %p77 = por %p75, %p76
      %p78 = scmp.ne.s32.totalorder %s70, %s73
      %p79 = scmp.eq.s32.totalorder %s20, 0
      %p80 = por %p78, %p79
      %p81 = scmp.ne.s32.totalorder %s70, %s73
      %p82 = scmp.eq.s32.totalorder %s25, 3
      %p83 = por %p81, %p82
      %p84 = scmp.ne.s32.totalorder %s73, %s74
      %p85 = scmp.eq.s32.totalorder %s25, 0
      %p86 = por %p84, %p85
      %p87 = scmp.ne.s32.totalorder %s73, %s74
      %p88 = scmp.eq.s32.totalorder %s26, 3
      %p89 = por %p87, %p88
      %p91 = scmp.ne.s32.totalorder %s74, %s90
      %p92 = scmp.eq.s32.totalorder %s26, 0
      %p93 = por %p91, %p92
      %s95 = sadd.s32 %s94, 1
      %p98 = scmp.eq.s32.totalorder %s20, 3
      %p99 = scmp.ne.s32.totalorder %s94, %s96
      %p100 = scmp.eq.s32.totalorder %s20, 0
      %p101 = por %p99, %p100
      %p102 = scmp.ne.s32.totalorder %s94, %s96
      %p103 = scmp.eq.s32.totalorder %s25, 3
      %p104 = por %p102, %p103
      %p105 = scmp.ne.s32.totalorder %s96, %s97
      %p106 = scmp.eq.s32.totalorder %s25, 0
      %p107 = por %p105, %p106
      %p108 = scmp.ne.s32.totalorder %s96, %s97
      %p109 = scmp.eq.s32.totalorder %s26, 3
      %p110 = por %p108, %p109
      %p112 = scmp.ne.s32.totalorder %s97, %s111
      %p113 = scmp.eq.s32.totalorder %s26, 0
      %p114 = por %p112, %p113
      %s115 = ssub.s32 %s27, %s39
      %s116 = ssub.s32 %s28, %s35
      %s117 = sor.u32 %s115, %s116
      %p118 = scmp.eq.s32.totalorder %s117, 0
      %s120 = sadd.s32 %s119, 1
      %s121 = scalar_select %p118, %s119, %s120
      %p124 = pneg %p118
      %p125 = scmp.eq.s32.totalorder %s20, 3
      %p126 = por %p124, %p125
      %p127 = scmp.ne.s32.totalorder %s119, %s122
      %p128 = scmp.eq.s32.totalorder %s20, 0
      %p129 = por %p127, %p128
      %p130 = scmp.ne.s32.totalorder %s119, %s122
      %p131 = scmp.eq.s32.totalorder %s25, 3
      %p132 = por %p130, %p131
      %p133 = scmp.ne.s32.totalorder %s122, %s123
      %p134 = scmp.eq.s32.totalorder %s25, 0
      %p135 = por %p133, %p134
      %p136 = scmp.ne.s32.totalorder %s122, %s123
      %p137 = scmp.eq.s32.totalorder %s26, 3
      %p138 = por %p136, %p137
      %p140 = scmp.ne.s32.totalorder %s123, %s139
      %p141 = scmp.eq.s32.totalorder %s26, 0
      %p142 = por %p140, %p141
      %p143 = scmp.le.s32.totalorder 1, %s20
      %p144 = scmp.lt.s32.totalorder %s20, 5
      %p145 = pnand %p143, %p144
      %p146 = pneg %p145
      // Predicated region
      $region9: #{tpu_custom_call.1} parent=5 // pred_check
        _
      $region10: #{tpu_custom_call.1} parent=5 // pred_check_branch
        %148 = sbr.rel (%p145) target = $region12
      $region11: #{tpu_custom_call.1} parent=5 // pred_region
        %s149 = ssub.s32 %s20, 1
        // Predicated region
        $region13: #{tpu_custom_call.1} parent=11 // pred_check
          %p150 = pneg %p107
        $region14: #{tpu_custom_call.1} parent=11 // pred_check_branch
          %152 = sbr.rel (%p150) target = $region16
        $region15: #{tpu_custom_call.1} parent=11 // pred_region
          _
        $region16: #{tpu_custom_call.1} parent=11 // pred_fallthru
          _
      $region12: #{tpu_custom_call.1} parent=5 // pred_fallthru
        _
      %p153 = scmp.lt.s32.totalorder %s20, 4
      // Predicated region
      $region17: #{tpu_custom_call.1} parent=5 // pred_check
        %p154 = pneg %p153
      $region18: #{tpu_custom_call.1} parent=5 // pred_check_branch
        %156 = sbr.rel (%p154) target = $region20
      $region19: #{tpu_custom_call.1} parent=5 // pred_region
        // Predicated region
        $region21: #{tpu_custom_call.1} parent=19 // pred_check
          %p157 = pneg %p54
        $region22: #{tpu_custom_call.1} parent=19 // pred_check_branch
          %159 = sbr.rel (%p157) target = $region24
        $region23: #{tpu_custom_call.1} parent=19 // pred_region
          %p160 = scmp.lt.s32.totalorder %s27, 1
          %s161 = scalar_select %p160, %s27, 1
          %p162 = scmp.lt.s32.totalorder %s28, 1
          %s163 = scalar_select %p162, %s28, 1
          %s164 = smul.addr %s161, 2
          %s165 = sadd.s32 %s163, %s164
          %s166 = smul.addr %s165, 8
          %s167 = scalar_lea.vmem %s1, %s166
        $region24: #{tpu_custom_call.1} parent=19 // pred_fallthru
          _
        // Predicated region
        $region25: #{tpu_custom_call.1} parent=19 // pred_check
          %p168 = pneg %p80
        $region26: #{tpu_custom_call.1} parent=19 // pred_check_branch
          %170 = sbr.rel (%p168) target = $region28
        $region27: #{tpu_custom_call.1} parent=19 // pred_region
          %p171 = scmp.lt.s32.totalorder %s28, 1
          %s172 = scalar_select %p171, %s28, 1
          %s173 = smul.addr %s172, 8
          %s174 = scalar_lea.vmem %s2, %s173
        $region28: #{tpu_custom_call.1} parent=19 // pred_fallthru
          _
      $region20: #{tpu_custom_call.1} parent=5 // pred_fallthru
        _
      %p175 = scmp.le.s32.totalorder 1, %s20
      %p176 = scmp.lt.s32.totalorder %s20, 5
      %p177 = pnand %p175, %p176
      %p178 = pneg %p177
      // Predicated region
      $region29: #{tpu_custom_call.1} parent=5 // pred_check
        _
      $region30: #{tpu_custom_call.1} parent=5 // pred_check_branch
        %180 = sbr.rel (%p177) target = $region32
      $region31: #{tpu_custom_call.1} parent=5 // pred_region
        %s181 = ssub.s32 %s20, 1
        %p182 = scmp.lt.s32.totalorder %s29, 1
        %s183 = scalar_select %p182, %s29, 1
        %p184 = scmp.lt.s32.totalorder %s30, 1
        %s185 = scalar_select %p184, %s30, 1
        %s186 = smul.addr %s183, 2
        %s187 = sadd.s32 %s185, %s186
        %s188 = smul.addr %s187, 8
        %s189 = scalar_lea.vmem %s1, %s188
        %p190 = pneg %p60
        %p191 = pneg %p57
        %p192 = scmp.lt.s32.totalorder %s30, 1
        %s193 = scalar_select %p192, %s30, 1
        %s194 = smul.addr %s193, 8
        %s195 = scalar_lea.vmem %s2, %s194
        %p196 = pneg %p86
        %p197 = pneg %p83
        %p198 = pneg %p107
        %p199 = pneg %p104
        %p200 = pneg %p135
        %p201 = pneg %p132
        %s202 = sand.u32 %s122, 1
        %s203 = scalar_lea.sflag [#allocation7], %s202
        %s204 = sand.u32 %s122, 1
        %s205 = smul.addr %s204, 8
        %s206 = scalar_lea.vmem [#allocation6], %s205
        %p207 = scmp.lt.s32.totalorder %s29, 1
        %s208 = scalar_select %p207, %s29, 1
        %p209 = scmp.lt.s32.totalorder %s30, 1
        %s210 = scalar_select %p209, %s30, 1
        %s211 = smul.addr %s208, 2
        %s212 = sadd.s32 %s210, %s211
        %s213 = smul.addr %s212, 8
        %s214 = scalar_lea.vmem %s1, %s213
        %p215 = scmp.lt.s32.totalorder %s30, 1
        %s216 = scalar_select %p215, %s30, 1
        %s217 = smul.addr %s216, 8
        %s218 = scalar_lea.vmem %s2, %s217
        %s219 = smul.u32 %s29, 16
        %s220 = smul.u32 %s30, 8
        %s221 = sadd.s32 %s219, %s220
        loop: start=0, step=1, limit=8
        $region33: #{tpu_custom_call.1} parent=31 // loop_pre_header
          _
        $region34: #{tpu_custom_call.1} parent=31 // loop_header
          %s223 = sphi 0, %s227
          %p224 = scmp.ge.s32.totalorder %s223, 8
        $region35: #{tpu_custom_call.1} parent=31 // loop_header_branch
          %226 = sbr.rel (%p224) target = $region39
        $region36: #{tpu_custom_call.1} parent=31 // loop_body
          %s228 = sadd.s32 %s221, %s223
          %s229 = sld [smem:[#allocation5 + %s228]]
          %s230 = smul.addr %s229, 16
          %s231 = scalar_lea.hbm %s4, %s230
          %s232 = scalar_lea.vmem [#allocation2], %s223
          %s233 = scalar_lea.sflag [#allocation3], %s223
          // Predicated region
          $region40: #{tpu_custom_call.1} parent=36 // pred_check
            _
          $region41: #{tpu_custom_call.1} parent=36 // pred_check_branch
            %235 = sbr.rel target = $region43
          $region42: #{tpu_custom_call.1} parent=36 // pred_region
            %236 = sst [smem:[#allocation10]] [#allocation9]
            %237 = sst [smem:[#allocation11]] [#allocation8]
          $region43: #{tpu_custom_call.1} parent=36 // pred_fallthru
            _
          %239 = shalt.err (0)
          %s241 = sshll.u32 %s232, 4
          %s242 = int_to_ptr.vmem [resolvable:$true] %s241
          %244 = dma.hbm_to_vmem [thread:$0]  %s231, 16, %s242, %s233
        $region37: #{tpu_custom_call.1} parent=31 // loop_footer
          %s227 = sadd.s32 1, %s223
        $region38: #{tpu_custom_call.1} parent=31 // loop_footer_branch
          %222 = sbr.rel target = $region34
        $region39: #{tpu_custom_call.1} parent=31 // loop_exit
          _
        %v245 = vld [vmem:[%s218] sm:$0xff]
        %v246 = vld [vmem:[%s214] sm:$0xff]
        %v247 = vld [vmem:[%s3] sm:$0x7]
        %vm248 = vcmp.eq.s32.totalorder %v246, 0
        %vm249 = vcmp.eq.s32.totalorder %v246, 1
        %v250 = vsel %vm249, 1, 0
        %251 = vset.pattern.permute.xlu0 0
        %252 = vperm.xlu0 %251, %v250
        %v253 = vpop.permute.xlu0 %252
        %vm254 = vcmp.eq.s32.totalorder %v253, 1
        %v255 = vlaneseq
        %v256 = vshrl.u32 %v255, 7
        %v257 = vsub.s32 1, %v256
        %v258 = vrot.slane %v247, %v257
        %v259 = vlaneseq
        %v260 = vshrl.u32 %v259, 7
        %v261 = vsub.s32 2, %v260
        %v262 = vrot.slane %v247, %v261
        %v263 = vsel %vm254, %v258, %v262
        %v264 = vsel %vm248, 1, 0
        %265 = vset.pattern.permute.xlu0 0
        %266 = vperm.xlu0 %265, %v264
        %v267 = vpop.permute.xlu0 %266
        %vm268 = vcmp.eq.s32.totalorder %v267, 1
        %v269 = vlaneseq
        %v270 = vshrl.u32 %v269, 7
        %v271 = vsub.s32 0, %v270
        %v272 = vrot.slane %v247, %v271
        %v273 = vsel %vm268, %v272, %v263
        %v274 = vadd.f32 %v245, %v273
        loop: start=0, step=1, limit=8
        $region44: #{tpu_custom_call.1} parent=31 // loop_pre_header
          _
        $region45: #{tpu_custom_call.1} parent=31 // loop_header
          %s276 = sphi 0, %s280
          %p277 = scmp.ge.s32.totalorder %s276, 8
        $region46: #{tpu_custom_call.1} parent=31 // loop_header_branch
          %279 = sbr.rel (%p277) target = $region50
        $region47: #{tpu_custom_call.1} parent=31 // loop_body
          %s281 = scalar_lea.sflag [#allocation3], %s276
          %283 = dma.done %s281, 16
        $region48: #{tpu_custom_call.1} parent=31 // loop_footer
          %s280 = sadd.s32 1, %s276
        $region49: #{tpu_custom_call.1} parent=31 // loop_footer_branch
          %275 = sbr.rel target = $region45
        $region50: #{tpu_custom_call.1} parent=31 // loop_exit
          _
        %v284 = vld [vmem:[#allocation2] sm:$0xff]
        %v285 = vmul.f32 %v284, 22.627417
        %v286 = vadd.f32 %v285, %v274
        %287 = vst [vmem:[%s206] sm:$0xff] %v286
        %s288 = sand.u32 %s122, 1
        %s289 = scalar_lea.sflag [#allocation7], %s288
        %s290 = sand.u32 %s122, 1
        %s291 = smul.addr %s290, 8
        %s292 = scalar_lea.vmem [#allocation6], %s291
        // Predicated region
        $region51: #{tpu_custom_call.1} parent=31 // pred_check
          %p293 = pneg %p132
        $region52: #{tpu_custom_call.1} parent=31 // pred_check_branch
          %295 = sbr.rel (%p293) target = $region54
        $region53: #{tpu_custom_call.1} parent=31 // pred_region
          %s297 = ssub.s32 128, 128
          %298 = vsyncadd %s289, %s297
          %s299 = smul.addr %s29, 2
          %s300 = sadd.s32 %s30, %s299
          %s301 = smul.addr %s300, 128
          %s302 = scalar_lea.hbm %s5, %s301
          %s304 = sshll.u32 %s292, 4
          %s305 = int_to_ptr.vmem [resolvable:$true] %s304
          %307 = dma.vmem_to_hbm [thread:$0]  %s305, 128, %s302, %s289
        $region54: #{tpu_custom_call.1} parent=31 // pred_fallthru
          _
      $region32: #{tpu_custom_call.1} parent=5 // pred_fallthru
        _
      %p308 = scmp.le.s32.totalorder 2, %s20
      // Predicated region
      $region55: #{tpu_custom_call.1} parent=5 // pred_check
        %p309 = pneg %p308
      $region56: #{tpu_custom_call.1} parent=5 // pred_check_branch
        %311 = sbr.rel (%p309) target = $region58
      $region57: #{tpu_custom_call.1} parent=5 // pred_region
        %s312 = ssub.s32 %s20, 2
        // Predicated region
        $region59: #{tpu_custom_call.1} parent=57 // pred_check
          %p313 = pneg %p138
        $region60: #{tpu_custom_call.1} parent=57 // pred_check_branch
          %315 = sbr.rel (%p313) target = $region62
        $region61: #{tpu_custom_call.1} parent=57 // pred_region
          %s316 = sand.u32 %s123, 1
          %s317 = scalar_lea.sflag [#allocation7], %s316
          %s318 = sand.u32 %s123, 1
          %s319 = smul.addr %s318, 8
          %s320 = scalar_lea.vmem [#allocation6], %s319
          %321 = dma.done %s317, 128
        $region62: #{tpu_custom_call.1} parent=57 // pred_fallthru
          _
      $region58: #{tpu_custom_call.1} parent=5 // pred_fallthru
        _
    $region6: #{tpu_custom_call.1} parent=1 // loop_footer
      %s24 = sadd.s32 1, %s20
    $region7: #{tpu_custom_call.1} parent=1 // loop_footer_branch
      %19 = sbr.rel target = $region3
    $region8: #{tpu_custom_call.1} parent=1 // loop_exit
      _
    %322 = vsyncpa [#allocation7], 1
    %s323 = scalar_lea.sflag [#allocation7], 1
    %324 = vsyncpa %s323, 1
  %325 = vsyncmov [#allocation3]
  %s326 = vpop.sfrf %325
  %p327 = scmp.eq.s32.totalorder %s326, 0
  %p328 = pneg %p327
  %330 = shalt.err (%p328)
  %s331 = scalar_lea.sflag [#allocation3], 1
  %332 = vsyncmov %s331
  %s333 = vpop.sfrf %332
  %p334 = scmp.eq.s32.totalorder %s333, 0
  %p335 = pneg %p334
  %337 = shalt.err (%p335)
  %s338 = scalar_lea.sflag [#allocation3], 2
  %339 = vsyncmov %s338
  %s340 = vpop.sfrf %339
  %p341 = scmp.eq.s32.totalorder %s340, 0
  %p342 = pneg %p341
  %344 = shalt.err (%p342)
  %s345 = scalar_lea.sflag [#allocation3], 3
  %346 = vsyncmov %s345
  %s347 = vpop.sfrf %346
  %p348 = scmp.eq.s32.totalorder %s347, 0
  %p349 = pneg %p348
  %351 = shalt.err (%p349)
  %s352 = scalar_lea.sflag [#allocation3], 4
  %353 = vsyncmov %s352
  %s354 = vpop.sfrf %353
  %p355 = scmp.eq.s32.totalorder %s354, 0
  %p356 = pneg %p355
  %358 = shalt.err (%p356)
  %s359 = scalar_lea.sflag [#allocation3], 5
  %360 = vsyncmov %s359
  %s361 = vpop.sfrf %360
  %p362 = scmp.eq.s32.totalorder %s361, 0
  %p363 = pneg %p362
  %365 = shalt.err (%p363)
  %s366 = scalar_lea.sflag [#allocation3], 6
  %367 = vsyncmov %s366
  %s368 = vpop.sfrf %367
  %p369 = scmp.eq.s32.totalorder %s368, 0
  %p370 = pneg %p369
  %372 = shalt.err (%p370)
  %s373 = scalar_lea.sflag [#allocation3], 7
  %374 = vsyncmov %s373
  %s375 = vpop.sfrf %374
  %p376 = scmp.eq.s32.totalorder %s375, 0
  %p377 = pneg %p376
  %379 = shalt.err (%p377)

</llo_original>
